<compile_context>
chip_gen: v6e
topology: v6e:2x2x1
jax: 0.10.0
libtpu: 0.0.40
codegen_flags: <defaults>
</compile_context>

<pallas_src>
import functools

import numpy as np
import jax
import jax.numpy as jnp
from jax.experimental import pallas as pl
from jax.experimental.pallas import tpu as pltpu


# ---------------------------------------------------------------------------
# small helpers
# ---------------------------------------------------------------------------
def _round_up(x, m):
    return (x + m - 1) // m * m


def _choose_cout_block(cout):
    # v6e/v7x MXUs are 2x256^2 -> prefer a 256-wide N block when it divides Cout,
    # else 128; otherwise take the whole (small) Cout as a single full block
    # (no channel padding, no HBM trim copy).
    if cout % 256 == 0:
        return 256
    if cout % 128 == 0:
        return 128
    return cout


def bilinear_matrix(n_in, n_out, align_corners=False):
    """(n_out, n_in) 1-D bilinear interpolation matrix (PyTorch semantics)."""
    if align_corners and n_out > 1:
        src = np.arange(n_out, dtype=np.float64) * (n_in - 1) / max(n_out - 1, 1)
    else:
        scale = n_in / n_out
        src = (np.arange(n_out, dtype=np.float64) + 0.5) * scale - 0.5
        src = np.maximum(src, 0.0)
    i0 = np.minimum(np.floor(src).astype(np.int64), n_in - 1)
    i1 = np.minimum(i0 + 1, n_in - 1)
    lam = src - i0
    M = np.zeros((n_out, n_in), dtype=np.float32)
    M[np.arange(n_out), i0] += (1.0 - lam).astype(np.float32)
    M[np.arange(n_out), i1] += lam.astype(np.float32)
    return M


def flat_bilinear_matrix(ho, wo, w_stride, s_in, hout, wout, align_corners=False):
    """Combined (s_in, hout*wout) matrix performing the separable bilinear upsample
    of the valid (ho, wo) region of a row-major flattened plane whose row stride is
    w_stride and whose padded flat length is s_in.  Wrap/pad positions get zero
    rows, so the conv's wrap-around columns / tail padding are trimmed for free."""
    Ah = bilinear_matrix(ho, hout, align_corners)        # (hout, ho)
    Aw = bilinear_matrix(wo, wout, align_corners)        # (wout, wo)
    kron = np.einsum("oh,pw->hwop", Ah, Aw).reshape(ho, wo, hout * wout)
    M = np.zeros((s_in, hout * wout), dtype=np.float32)
    for h in range(ho):
        M[h * w_stride:h * w_stride + wo, :] = kron[h]
    return M


# ---------------------------------------------------------------------------
# Kernel 1: 3x3 VALID conv (+ bias), channel-major, flattened spatial.
# ---------------------------------------------------------------------------
def _conv3x3_kernel(x_ref, w_ref, b_ref, o_ref, *, width, n_out):
    # x_ref: (Cin, Sp_in)   flattened, zero-padded input plane (compute dtype)
    # w_ref: (9, CB, Cin)   taps in dy*3+dx order (compute dtype)
    # b_ref: (CB, 1)        f32
    # o_ref: (CB, n_out)    channel-major flattened conv planes, f32
    acc = jnp.zeros(o_ref.shape, jnp.float32)
    for dy in range(3):
        for dx in range(3):
            off = dy * width + dx
            tap = x_ref[:, off:off + n_out]           # lane-offset slice, no reshape
            acc = acc + jnp.dot(w_ref[dy * 3 + dx], tap,
                                preferred_element_type=jnp.float32)
    o_ref[...] = acc + b_ref[...]
    # TODO(synk): for Cin this small the 9 taps could also be folded into a single
    # K=9*Cin matmul via an in-VMEM im2col scratch (fewer MXU push/drain cadences).


def conv3x3_valid_flat(x, w, b, compute_dtype=jnp.float32):
    """3x3 conv, stride 1, no padding.  x:(B,Cin,H,W)  w:(Cout,Cin,3,3)  b:(Cout,)
    Returns (out, meta): out is (B, Cout, s_out) flattened channel-major planes;
    the valid conv result lives at flat index h*W + w (h < H-2, w < W-2); all
    other positions are junk that the fusion matrix zeroes out."""
    B, Cin, H, W = x.shape
    Cout = w.shape[0]
    Ho, Wo = H - 2, W - 2
    s_out = _round_up(Ho * W, 128)                  # lane-dense output planes
    sp_in = _round_up(2 * W + 2 + s_out, 128)       # covers max tap offset + slice

    # Single cast in the wrapper (bf16 path: halves conv-input HBM traffic).
    x_flat = x.reshape(B, Cin, H * W).astype(compute_dtype)
    x_flat = jnp.pad(x_flat, ((0, 0), (0, 0), (0, sp_in - H * W)))
    wt = jnp.transpose(w, (2, 3, 0, 1)).reshape(9, Cout, Cin).astype(compute_dtype)
    bc = b.reshape(Cout, 1).astype(jnp.float32)

    CB = _choose_cout_block(Cout)
    kernel = functools.partial(_conv3x3_kernel, width=W, n_out=s_out)
    out = pl.pallas_call(
        kernel,
        out_shape=jax.ShapeDtypeStruct((B, Cout, s_out), jnp.float32),
        grid=(B, Cout // CB),
        in_specs=[
            pl.BlockSpec((None, Cin, sp_in), lambda bb, j: (bb, 0, 0)),
            pl.BlockSpec((9, CB, Cin), lambda bb, j: (0, j, 0)),
            pl.BlockSpec((CB, 1), lambda bb, j: (j, 0)),
        ],
        out_specs=pl.BlockSpec((None, CB, s_out), lambda bb, j: (bb, j, 0)),
        compiler_params=pltpu.CompilerParams(
            dimension_semantics=("parallel", "parallel"),
            vmem_limit_bytes=32 * 1024 * 1024,   # safe on v7x (64 MiB physical)
        ),
    )(x_flat, wt, bc)
    return out, (Ho, Wo, W, s_out)


# ---------------------------------------------------------------------------
# Kernel 2: fused bilinear upsample (both branches) + add.
# Each branch is one lane-dense matmul against a constant combined matrix.
# ---------------------------------------------------------------------------
def _fuse_kernel(hi_ref, lo_ref, mh_ref, ml_ref, o_ref):
    # hi_ref: (C, S_h)  lo_ref: (C, S_l)  m*_ref: (S_*, Hout*Wout)  o_ref: (C, Hout*Wout)
    o_ref[...] = (
        jnp.dot(hi_ref[...], mh_ref[...], preferred_element_type=jnp.float32)
        + jnp.dot(lo_ref[...], ml_ref[...], preferred_element_type=jnp.float32))


def _upsample_kernel(x_ref, m_ref, o_ref):
    o_ref[...] = jnp.dot(x_ref[...], m_ref[...], preferred_element_type=jnp.float32)


def _fusion_compiler_params():
    return pltpu.CompilerParams(
        dimension_semantics=("parallel",),        # batch steps shard on v7x's 2 TCs
        vmem_limit_bytes=32 * 1024 * 1024,
    )


def fuse_upsample_add(high_flat, meta_h, low_flat, meta_l, hout, wout,
                      align_corners=False):
    B, C, s_h = high_flat.shape
    _, _, s_l = low_flat.shape
    ho_h, wo_h, wstride_h, _ = meta_h
    ho_l, wo_l, wstride_l, _ = meta_l
    nout = hout * wout
    m_h = jnp.asarray(flat_bilinear_matrix(ho_h, wo_h, wstride_h, s_h, hout, wout,
                                           align_corners))      # f32 always
    m_l = jnp.asarray(flat_bilinear_matrix(ho_l, wo_l, wstride_l, s_l, hout, wout,
                                           align_corners))
    out = pl.pallas_call(
        _fuse_kernel,
        out_shape=jax.ShapeDtypeStruct((B, C, nout), jnp.float32),
        grid=(B,),
        in_specs=[
            pl.BlockSpec((None, C, s_h), lambda bb: (bb, 0, 0)),
            pl.BlockSpec((None, C, s_l), lambda bb: (bb, 0, 0)),
            pl.BlockSpec((s_h, nout), lambda bb: (0, 0)),   # constant -> fetched once
            pl.BlockSpec((s_l, nout), lambda bb: (0, 0)),
        ],
        out_specs=pl.BlockSpec((None, C, nout), lambda bb: (bb, 0, 0)),
        compiler_params=_fusion_compiler_params(),
    )(high_flat, low_flat, m_h, m_l)
    return out.reshape(B, C, hout, wout)        # free row-major reshape


def upsample_only(x_flat, meta, hout, wout, align_corners=False):
    B, C, s_in = x_flat.shape
    ho, wo, wstride, _ = meta
    nout = hout * wout
    m = jnp.asarray(flat_bilinear_matrix(ho, wo, wstride, s_in, hout, wout,
                                         align_corners))
    out = pl.pallas_call(
        _upsample_kernel,
        out_shape=jax.ShapeDtypeStruct((B, C, nout), jnp.float32),
        grid=(B,),
        in_specs=[
            pl.BlockSpec((None, C, s_in), lambda bb: (bb, 0, 0)),
            pl.BlockSpec((s_in, nout), lambda bb: (0, 0)),
        ],
        out_specs=pl.BlockSpec((None, C, nout), lambda bb: (bb, 0, 0)),
        compiler_params=_fusion_compiler_params(),
    )(x_flat, m)
    return out.reshape(B, C, hout, wout)


# ---------------------------------------------------------------------------
# Module forward
# ---------------------------------------------------------------------------
def multi_resolution_fusion(x_high, x_low, w_high, b_high, w_low, b_low,
                            up_scale_high, up_scale_low,
                            compute_dtype=jnp.float32, align_corners=False):
    conv_h, meta_h = conv3x3_valid_flat(x_high, w_high, b_high, compute_dtype)
    ho_h, wo_h, _, _ = meta_h
    hout, wout = ho_h * up_scale_high, wo_h * up_scale_high
    if x_low is None:
        return upsample_only(conv_h, meta_h, hout, wout, align_corners)
    conv_l, meta_l = conv3x3_valid_flat(x_low, w_low, b_low, compute_dtype)
    ho_l, wo_l, _, _ = meta_l
    assert hout == ho_l * up_scale_low and wout == wo_l * up_scale_low, \
        "branch output sizes must match"
    return fuse_upsample_add(conv_h, meta_h, conv_l, meta_l, hout, wout,
                             align_corners)


# ---------------------------------------------------------------------------
# Reference (plain JAX / XLA) for correctness checks
# ---------------------------------------------------------------------------
def _ref_forward(x_high, x_low, w_high, b_high, w_low, b_low,
                 up_scale_high, up_scale_low, align_corners=False):
    dn = ("NCHW", "OIHW", "NCHW")
    ch = jax.lax.conv_general_dilated(x_high, w_high, (1, 1), "VALID",
                                      dimension_numbers=dn) + b_high[None, :, None, None]
    Hh, Wh = ch.shape[2], ch.shape[3]
    Hout, Wout = Hh * up_scale_high, Wh * up_scale_high
    Ahh = jnp.asarray(bilinear_matrix(Hh, Hout, align_corners))
    Awh = jnp.asarray(bilinear_matrix(Wh, Wout, align_corners))
    up_h = jnp.einsum("oh,bchw,pw->bcop", Ahh, ch, Awh)
    if x_low is None:
        return up_h
    cl = jax.lax.conv_general_dilated(x_low, w_low, (1, 1), "VALID",
                                      dimension_numbers=dn) + b_low[None, :, None, None]
    Hl, Wl = cl.shape[2], cl.shape[3]
    Ahl = jnp.asarray(bilinear_matrix(Hl, Hout, align_corners))
    Awl = jnp.asarray(bilinear_matrix(Wl, Wout, align_corners))
    up_l = jnp.einsum("oh,bchw,pw->bcop", Ahl, cl, Awl)
    return up_h + up_l


# ---------------------------------------------------------------------------
if __name__ == "__main__":
    key = jax.random.PRNGKey(0)
    channels = 4
    up_scale_high, up_scale_low = 4, 2
    high_shape = (2, 3, 10, 10)   # conv -> 8x8   -> x4 -> 32x32
    low_shape = (2, 5, 18, 18)    # conv -> 16x16 -> x2 -> 32x32

    ks = jax.random.split(key, 6)
    x_high = jax.random.normal(ks[0], high_shape, jnp.float32)
    x_low = jax.random.normal(ks[1], low_shape, jnp.float32)
    w_high = 0.1 * jax.random.normal(ks[2], (channels, high_shape[1], 3, 3), jnp.float32)
    b_high = 0.1 * jax.random.normal(ks[3], (channels,), jnp.float32)
    w_low = 0.1 * jax.random.normal(ks[4], (channels, low_shape[1], 3, 3), jnp.float32)
    b_low = 0.1 * jax.random.normal(ks[5], (channels,), jnp.float32)

    ref = jax.block_until_ready(
        _ref_forward(x_high, x_low, w_high, b_high, w_low, b_low,
                     up_scale_high, up_scale_low))

    # f32 path (tight check)
    out = multi_resolution_fusion(x_high, x_low, w_high, b_high, w_low, b_low,
                                  up_scale_high, up_scale_low,
                                  compute_dtype=jnp.float32)
    out = jax.block_until_ready(out)
    assert out.shape == (2, channels, 32, 32), out.shape
    np.testing.assert_allclose(np.asarray(out), np.asarray(ref), rtol=1e-4, atol=1e-4)

    # bf16 conv-operand path (f32 accumulation, f32 interpolation) — looser tolerance
    out_bf16 = multi_resolution_fusion(x_high, x_low, w_high, b_high, w_low, b_low,
                                       up_scale_high, up_scale_low,
                                       compute_dtype=jnp.bfloat16)
    out_bf16 = jax.block_until_ready(out_bf16)
    np.testing.assert_allclose(np.asarray(out_bf16), np.asarray(ref),
                               rtol=2e-2, atol=2e-2)

    # x_low = None single-branch path (spec: return high_upsampled)
    ref_single = jax.block_until_ready(
        _ref_forward(x_high, None, w_high, b_high, None, None,
                     up_scale_high, up_scale_low))
    out_single = multi_resolution_fusion(x_high, None, w_high, b_high, None, None,
                                         up_scale_high, up_scale_low,
                                         compute_dtype=jnp.float32)
    out_single = jax.block_until_ready(out_single)
    np.testing.assert_allclose(np.asarray(out_single), np.asarray(ref_single),
                               rtol=1e-4, atol=1e-4)

    print("KERNEL_OK")
</pallas_src>

<mosaic_0001>
module attributes {stable_mosaic.version = 11 : i64} {
  func.func @_conv3x3_kernel(%arg0: i32, %arg1: i32, %arg2: memref<1x3x256xf32, #tpu.memory_space<vmem>>, %arg3: memref<9x4x3xf32, #tpu.memory_space<vmem>>, %arg4: memref<4x1xf32, #tpu.memory_space<vmem>>, %arg5: memref<1x4x128xf32, #tpu.memory_space<vmem>>) attributes {dimension_semantics = [#tpu.dimension_semantics<parallel>, #tpu.dimension_semantics<parallel>], iteration_bounds = array<i64: 2, 1>, scalar_prefetch = 0 : i64, scratch_operands = 0 : i64, tpu.core_type = #tpu.core_type<tc>, window_params = [{transform_indices = @transform_0, window_bounds = array<i64: 1, 3, 256>}, {transform_indices = @transform_1, window_bounds = array<i64: 9, 4, 3>}, {transform_indices = @transform_2, window_bounds = array<i64: 4, 1>}, {transform_indices = @transform_3, window_bounds = array<i64: 1, 4, 128>}]} {
    %cst = arith.constant 0.000000e+00 : f32
    %0 = vector.broadcast %cst : f32 to vector<4x128xf32>
    %c0 = arith.constant 0 : index
    %c0_0 = arith.constant 0 : index
    %c0_1 = arith.constant 0 : index
    %1 = vector.load %arg2[%c0, %c0_0, %c0_1] : memref<1x3x256xf32, #tpu.memory_space<vmem>>, vector<1x3x128xf32>
    %2 = vector.shape_cast %1 : vector<1x3x128xf32> to vector<3x128xf32>
    %c0_2 = arith.constant 0 : index
    %c0_3 = arith.constant 0 : index
    %c0_4 = arith.constant 0 : index
    %3 = vector.load %arg3[%c0_2, %c0_3, %c0_4] : memref<9x4x3xf32, #tpu.memory_space<vmem>>, vector<1x4x3xf32>
    %4 = vector.shape_cast %3 : vector<1x4x3xf32> to vector<4x3xf32>
    %cst_5 = arith.constant dense<0.000000e+00> : vector<4x128xf32>
    %5 = tpu.matmul %4, %2, %cst_5 {dimension_numbers = #tpu.dot_dimension_numbers<[1], [0], [0], [1], [0, 0, 1, 1], [], []>} : vector<4x3xf32>, vector<3x128xf32>, vector<4x128xf32> -> vector<4x128xf32>
    %6 = arith.addf %0, %5 : vector<4x128xf32>
    %c0_6 = arith.constant 0 : index
    %c0_7 = arith.constant 0 : index
    %c1 = arith.constant 1 : index
    %7 = vector.load %arg2[%c0_6, %c0_7, %c1] : memref<1x3x256xf32, #tpu.memory_space<vmem>>, vector<1x3x128xf32>
    %8 = vector.shape_cast %7 : vector<1x3x128xf32> to vector<3x128xf32>
    %c1_8 = arith.constant 1 : index
    %c0_9 = arith.constant 0 : index
    %c0_10 = arith.constant 0 : index
    %9 = vector.load %arg3[%c1_8, %c0_9, %c0_10] : memref<9x4x3xf32, #tpu.memory_space<vmem>>, vector<1x4x3xf32>
    %10 = vector.shape_cast %9 : vector<1x4x3xf32> to vector<4x3xf32>
    %cst_11 = arith.constant dense<0.000000e+00> : vector<4x128xf32>
    %11 = tpu.matmul %10, %8, %cst_11 {dimension_numbers = #tpu.dot_dimension_numbers<[1], [0], [0], [1], [0, 0, 1, 1], [], []>} : vector<4x3xf32>, vector<3x128xf32>, vector<4x128xf32> -> vector<4x128xf32>
    %12 = arith.addf %6, %11 : vector<4x128xf32>
    %c0_12 = arith.constant 0 : index
    %c0_13 = arith.constant 0 : index
    %c2 = arith.constant 2 : index
    %13 = vector.load %arg2[%c0_12, %c0_13, %c2] : memref<1x3x256xf32, #tpu.memory_space<vmem>>, vector<1x3x128xf32>
    %14 = vector.shape_cast %13 : vector<1x3x128xf32> to vector<3x128xf32>
    %c2_14 = arith.constant 2 : index
    %c0_15 = arith.constant 0 : index
    %c0_16 = arith.constant 0 : index
    %15 = vector.load %arg3[%c2_14, %c0_15, %c0_16] : memref<9x4x3xf32, #tpu.memory_space<vmem>>, vector<1x4x3xf32>
    %16 = vector.shape_cast %15 : vector<1x4x3xf32> to vector<4x3xf32>
    %cst_17 = arith.constant dense<0.000000e+00> : vector<4x128xf32>
    %17 = tpu.matmul %16, %14, %cst_17 {dimension_numbers = #tpu.dot_dimension_numbers<[1], [0], [0], [1], [0, 0, 1, 1], [], []>} : vector<4x3xf32>, vector<3x128xf32>, vector<4x128xf32> -> vector<4x128xf32>
    %18 = arith.addf %12, %17 : vector<4x128xf32>
    %c0_18 = arith.constant 0 : index
    %c0_19 = arith.constant 0 : index
    %c10 = arith.constant 10 : index
    %19 = vector.load %arg2[%c0_18, %c0_19, %c10] : memref<1x3x256xf32, #tpu.memory_space<vmem>>, vector<1x3x128xf32>
    %20 = vector.shape_cast %19 : vector<1x3x128xf32> to vector<3x128xf32>
    %c3 = arith.constant 3 : index
    %c0_20 = arith.constant 0 : index
    %c0_21 = arith.constant 0 : index
    %21 = vector.load %arg3[%c3, %c0_20, %c0_21] : memref<9x4x3xf32, #tpu.memory_space<vmem>>, vector<1x4x3xf32>
    %22 = vector.shape_cast %21 : vector<1x4x3xf32> to vector<4x3xf32>
    %cst_22 = arith.constant dense<0.000000e+00> : vector<4x128xf32>
    %23 = tpu.matmul %22, %20, %cst_22 {dimension_numbers = #tpu.dot_dimension_numbers<[1], [0], [0], [1], [0, 0, 1, 1], [], []>} : vector<4x3xf32>, vector<3x128xf32>, vector<4x128xf32> -> vector<4x128xf32>
    %24 = arith.addf %18, %23 : vector<4x128xf32>
    %c0_23 = arith.constant 0 : index
    %c0_24 = arith.constant 0 : index
    %c11 = arith.constant 11 : index
    %25 = vector.load %arg2[%c0_23, %c0_24, %c11] : memref<1x3x256xf32, #tpu.memory_space<vmem>>, vector<1x3x128xf32>
    %26 = vector.shape_cast %25 : vector<1x3x128xf32> to vector<3x128xf32>
    %c4 = arith.constant 4 : index
    %c0_25 = arith.constant 0 : index
    %c0_26 = arith.constant 0 : index
    %27 = vector.load %arg3[%c4, %c0_25, %c0_26] : memref<9x4x3xf32, #tpu.memory_space<vmem>>, vector<1x4x3xf32>
    %28 = vector.shape_cast %27 : vector<1x4x3xf32> to vector<4x3xf32>
    %cst_27 = arith.constant dense<0.000000e+00> : vector<4x128xf32>
    %29 = tpu.matmul %28, %26, %cst_27 {dimension_numbers = #tpu.dot_dimension_numbers<[1], [0], [0], [1], [0, 0, 1, 1], [], []>} : vector<4x3xf32>, vector<3x128xf32>, vector<4x128xf32> -> vector<4x128xf32>
    %30 = arith.addf %24, %29 : vector<4x128xf32>
    %c0_28 = arith.constant 0 : index
    %c0_29 = arith.constant 0 : index
    %c12 = arith.constant 12 : index
    %31 = vector.load %arg2[%c0_28, %c0_29, %c12] : memref<1x3x256xf32, #tpu.memory_space<vmem>>, vector<1x3x128xf32>
    %32 = vector.shape_cast %31 : vector<1x3x128xf32> to vector<3x128xf32>
    %c5 = arith.constant 5 : index
    %c0_30 = arith.constant 0 : index
    %c0_31 = arith.constant 0 : index
    %33 = vector.load %arg3[%c5, %c0_30, %c0_31] : memref<9x4x3xf32, #tpu.memory_space<vmem>>, vector<1x4x3xf32>
    %34 = vector.shape_cast %33 : vector<1x4x3xf32> to vector<4x3xf32>
    %cst_32 = arith.constant dense<0.000000e+00> : vector<4x128xf32>
    %35 = tpu.matmul %34, %32, %cst_32 {dimension_numbers = #tpu.dot_dimension_numbers<[1], [0], [0], [1], [0, 0, 1, 1], [], []>} : vector<4x3xf32>, vector<3x128xf32>, vector<4x128xf32> -> vector<4x128xf32>
    %36 = arith.addf %30, %35 : vector<4x128xf32>
    %c0_33 = arith.constant 0 : index
    %c0_34 = arith.constant 0 : index
    %c20 = arith.constant 20 : index
    %37 = vector.load %arg2[%c0_33, %c0_34, %c20] : memref<1x3x256xf32, #tpu.memory_space<vmem>>, vector<1x3x128xf32>
    %38 = vector.shape_cast %37 : vector<1x3x128xf32> to vector<3x128xf32>
    %c6 = arith.constant 6 : index
    %c0_35 = arith.constant 0 : index
    %c0_36 = arith.constant 0 : index
    %39 = vector.load %arg3[%c6, %c0_35, %c0_36] : memref<9x4x3xf32, #tpu.memory_space<vmem>>, vector<1x4x3xf32>
    %40 = vector.shape_cast %39 : vector<1x4x3xf32> to vector<4x3xf32>
    %cst_37 = arith.constant dense<0.000000e+00> : vector<4x128xf32>
    %41 = tpu.matmul %40, %38, %cst_37 {dimension_numbers = #tpu.dot_dimension_numbers<[1], [0], [0], [1], [0, 0, 1, 1], [], []>} : vector<4x3xf32>, vector<3x128xf32>, vector<4x128xf32> -> vector<4x128xf32>
    %42 = arith.addf %36, %41 : vector<4x128xf32>
    %c0_38 = arith.constant 0 : index
    %c0_39 = arith.constant 0 : index
    %c21 = arith.constant 21 : index
    %43 = vector.load %arg2[%c0_38, %c0_39, %c21] : memref<1x3x256xf32, #tpu.memory_space<vmem>>, vector<1x3x128xf32>
    %44 = vector.shape_cast %43 : vector<1x3x128xf32> to vector<3x128xf32>
    %c7 = arith.constant 7 : index
    %c0_40 = arith.constant 0 : index
    %c0_41 = arith.constant 0 : index
    %45 = vector.load %arg3[%c7, %c0_40, %c0_41] : memref<9x4x3xf32, #tpu.memory_space<vmem>>, vector<1x4x3xf32>
    %46 = vector.shape_cast %45 : vector<1x4x3xf32> to vector<4x3xf32>
    %cst_42 = arith.constant dense<0.000000e+00> : vector<4x128xf32>
    %47 = tpu.matmul %46, %44, %cst_42 {dimension_numbers = #tpu.dot_dimension_numbers<[1], [0], [0], [1], [0, 0, 1, 1], [], []>} : vector<4x3xf32>, vector<3x128xf32>, vector<4x128xf32> -> vector<4x128xf32>
    %48 = arith.addf %42, %47 : vector<4x128xf32>
    %c0_43 = arith.constant 0 : index
    %c0_44 = arith.constant 0 : index
    %c22 = arith.constant 22 : index
    %49 = vector.load %arg2[%c0_43, %c0_44, %c22] : memref<1x3x256xf32, #tpu.memory_space<vmem>>, vector<1x3x128xf32>
    %50 = vector.shape_cast %49 : vector<1x3x128xf32> to vector<3x128xf32>
    %c8 = arith.constant 8 : index
    %c0_45 = arith.constant 0 : index
    %c0_46 = arith.constant 0 : index
    %51 = vector.load %arg3[%c8, %c0_45, %c0_46] : memref<9x4x3xf32, #tpu.memory_space<vmem>>, vector<1x4x3xf32>
    %52 = vector.shape_cast %51 : vector<1x4x3xf32> to vector<4x3xf32>
    %cst_47 = arith.constant dense<0.000000e+00> : vector<4x128xf32>
    %53 = tpu.matmul %52, %50, %cst_47 {dimension_numbers = #tpu.dot_dimension_numbers<[1], [0], [0], [1], [0, 0, 1, 1], [], []>} : vector<4x3xf32>, vector<3x128xf32>, vector<4x128xf32> -> vector<4x128xf32>
    %54 = arith.addf %48, %53 : vector<4x128xf32>
    %c0_48 = arith.constant 0 : index
    %c0_49 = arith.constant 0 : index
    %55 = vector.load %arg4[%c0_48, %c0_49] : memref<4x1xf32, #tpu.memory_space<vmem>>, vector<4x1xf32>
    %56 = vector.broadcast %55 : vector<4x1xf32> to vector<4x128xf32>
    %57 = arith.addf %54, %56 : vector<4x128xf32>
    %c0_50 = arith.constant 0 : index
    %c0_51 = arith.constant 0 : index
    %c0_52 = arith.constant 0 : index
    %58 = vector.load %arg5[%c0_50, %c0_51, %c0_52] : memref<1x4x128xf32, #tpu.memory_space<vmem>>, vector<1x4x128xf32>
    %59 = vector.shape_cast %58 : vector<1x4x128xf32> to vector<4x128xf32>
    %60 = vector.shape_cast %57 : vector<4x128xf32> to vector<1x4x128xf32>
    tpu.vector_store %arg5[%c0_50, %c0_51, %c0_52], %60 {strides = array<i32>} : memref<1x4x128xf32, #tpu.memory_space<vmem>>, vector<1x4x128xf32>,
    return
  }
  func.func @transform_0(%arg0: i32, %arg1: i32) -> (i32, i32, i32) {
    %c0_i32 = arith.constant 0 : i32
    %c0_i32_0 = arith.constant 0 : i32
    %c0_i32_1 = arith.constant 0 : i32
    return %arg0, %c0_i32, %c0_i32_0 : i32, i32, i32
  }
  func.func @transform_1(%arg0: i32, %arg1: i32) -> (i32, i32, i32) {
    %c0_i32 = arith.constant 0 : i32
    %c0_i32_0 = arith.constant 0 : i32
    %c0_i32_1 = arith.constant 0 : i32
    return %c0_i32, %arg1, %c0_i32_0 : i32, i32, i32
  }
  func.func @transform_2(%arg0: i32, %arg1: i32) -> (i32, i32) {
    %c0_i32 = arith.constant 0 : i32
    %c0_i32_0 = arith.constant 0 : i32
    return %arg1, %c0_i32 : i32, i32
  }
  func.func @transform_3(%arg0: i32, %arg1: i32) -> (i32, i32, i32) {
    %c0_i32 = arith.constant 0 : i32
    %c0_i32_0 = arith.constant 0 : i32
    return %arg0, %arg1, %c0_i32 : i32, i32, i32
  }
}

</mosaic_0001>

<llo_original>
// kernel: tpu_custom_call.1
$region0: #{tpu_custom_call.1}
  #allocation0 [shape = 'u32[]', space=smem, size = 0x4, offset = 0x4, fixed_abs, tag = 'smem constant byte address 0x4 - core index']
  #allocation1 [shape = 'u32[144,128]{1,0:T(1,128)}', space=vmem, size = 0x12000, scoped, tag = 'internal scratch']
  %s0 = inlined_call_operand.vmem [shape: f32[2,3,256], index: 0, kind: input, shape index: {}]
  %s1 = inlined_call_operand.vmem [shape: f32[9,4,3], index: 1, kind: input, shape index: {}]
  %s2 = inlined_call_operand.vmem [shape: f32[4,1], index: 2, kind: input, shape index: {}]
  %s3 = inlined_call_operand.hbm [shape: f32[2,4,128], index: 3, kind: output, shape index: {}]
  %s4 = sld [smem:[#allocation0]]
  $region45: #{tpu_custom_call.1} parent=0
    _
  %s6 = ssub.s32 1, %s4
  %s7 = scalar_select 0, %s6, %s4
  $region1: #{tpu_custom_call.1} parent=0
    #allocation2 [shape = 'u8[4096]{0}', space=vmem, size = 0x1000, scoped, tag = 'output window, operand 0']
    #allocation3 [shape = 's32[2]{0}', space=sflag, size = 0x8, scoped, tag = 'scoped memory for tpu_custom_call.1']
    %8 = vsyncpa [#allocation3], 0
    %s9 = scalar_lea.sflag [#allocation3], 1
    %10 = vsyncpa %s9, 0
    loop: start=0, step=1, limit=4
    $region2: #{tpu_custom_call.1} parent=1 // loop_pre_header
      _
    $region3: #{tpu_custom_call.1} parent=1 // loop_header
      %s12 = sphi 0, %s16
      %p13 = scmp.ge.s32.totalorder %s12, 4
      %s19 = sphi 0, %s31
      %s20 = sphi 0, %s27
      %s21 = sphi 0, %s19
      %s22 = sphi 0, %s20
      %s23 = sphi 0, %s21
      %s24 = sphi 0, %s22
      %s34 = sphi 0, %s36
      %s37 = sphi 0, %s34
      %s38 = sphi 0, %s37
      %s54 = sphi 0, %s38
      %s60 = sphi 0, %s62
      %s63 = sphi 0, %s60
      %s64 = sphi 0, %s63
      %s80 = sphi 0, %s64
      %s86 = sphi 0, %s88
      %s89 = sphi 0, %s86
      %s90 = sphi 0, %s89
      %s106 = sphi 0, %s90
      %s114 = sphi 0, %s116
      %s117 = sphi 0, %s114
      %s118 = sphi 0, %s117
      %s134 = sphi 0, %s118
    $region4: #{tpu_custom_call.1} parent=1 // loop_header_branch
      %15 = sbr.rel (%p13) target = $region8
    $region5: #{tpu_custom_call.1} parent=1 // loop_body
      %s17 = ssub.s32 %s12, 1
      %s18 = ssub.s32 %s12, 2
      %s25 = sadd.s32 1, %s20
      %p26 = scmp.ge.s32.totalorder %s25, 1
      %s27 = scalar_select %p26, 0, %s25
      %s28 = sadd.s32 1, %s19
      %s29 = scalar_select %p26, %s28, %s19
      %p30 = scmp.ge.s32.totalorder %s29, 2
      %s31 = scalar_select %p30, 0, %s29
      %s32 = ssub.s32 %s19, %s31
      %p33 = scmp.eq.s32.totalorder %s32, 0
      %s35 = sadd.s32 %s34, 1
      %s36 = scalar_select %p33, %s34, %s35
      %p39 = pneg %p33
      %p40 = scmp.eq.s32.totalorder %s12, 1
      %p41 = por %p39, %p40
      %p42 = scmp.ne.s32.totalorder %s34, %s37
      %p43 = scmp.eq.s32.totalorder %s12, 0
      %p44 = por %p42, %p43
      %p45 = scmp.ne.s32.totalorder %s34, %s37
      %p46 = scmp.eq.s32.totalorder %s17, 1
      %p47 = por %p45, %p46
      %p48 = scmp.ne.s32.totalorder %s37, %s38
      %p49 = scmp.eq.s32.totalorder %s17, 0
      %p50 = por %p48, %p49
      %p51 = scmp.ne.s32.totalorder %s37, %s38
      %p52 = scmp.eq.s32.totalorder %s18, 1
      %p53 = por %p51, %p52
      %p55 = scmp.ne.s32.totalorder %s38, %s54
      %p56 = scmp.eq.s32.totalorder %s18, 0
      %p57 = por %p55, %p56
      %s58 = ssub.s32 %s20, %s27
      %p59 = scmp.eq.s32.totalorder %s58, 0
      %s61 = sadd.s32 %s60, 1
      %s62 = scalar_select %p59, %s60, %s61
      %p65 = pneg %p59
      %p66 = scmp.eq.s32.totalorder %s12, 1
      %p67 = por %p65, %p66
      %p68 = scmp.ne.s32.totalorder %s60, %s63
      %p69 = scmp.eq.s32.totalorder %s12, 0
      %p70 = por %p68, %p69
      %p71 = scmp.ne.s32.totalorder %s60, %s63
      %p72 = scmp.eq.s32.totalorder %s17, 1
      %p73 = por %p71, %p72
      %p74 = scmp.ne.s32.totalorder %s63, %s64
      %p75 = scmp.eq.s32.totalorder %s17, 0
      %p76 = por %p74, %p75
      %p77 = scmp.ne.s32.totalorder %s63, %s64
      %p78 = scmp.eq.s32.totalorder %s18, 1
      %p79 = por %p77, %p78
      %p81 = scmp.ne.s32.totalorder %s64, %s80
      %p82 = scmp.eq.s32.totalorder %s18, 0
      %p83 = por %p81, %p82
      %s84 = ssub.s32 %s20, %s27
      %p85 = scmp.eq.s32.totalorder %s84, 0
      %s87 = sadd.s32 %s86, 1
      %s88 = scalar_select %p85, %s86, %s87
      %p91 = pneg %p85
      %p92 = scmp.eq.s32.totalorder %s12, 1
      %p93 = por %p91, %p92
      %p94 = scmp.ne.s32.totalorder %s86, %s89
      %p95 = scmp.eq.s32.totalorder %s12, 0
      %p96 = por %p94, %p95
      %p97 = scmp.ne.s32.totalorder %s86, %s89
      %p98 = scmp.eq.s32.totalorder %s17, 1
      %p99 = por %p97, %p98
      %p100 = scmp.ne.s32.totalorder %s89, %s90
      %p101 = scmp.eq.s32.totalorder %s17, 0
      %p102 = por %p100, %p101
      %p103 = scmp.ne.s32.totalorder %s89, %s90
      %p104 = scmp.eq.s32.totalorder %s18, 1
      %p105 = por %p103, %p104
      %p107 = scmp.ne.s32.totalorder %s90, %s106
      %p108 = scmp.eq.s32.totalorder %s18, 0
      %p109 = por %p107, %p108
      %s110 = ssub.s32 %s19, %s31
      %s111 = ssub.s32 %s20, %s27
      %s112 = sor.u32 %s110, %s111
      %p113 = scmp.eq.s32.totalorder %s112, 0
      %s115 = sadd.s32 %s114, 1
      %s116 = scalar_select %p113, %s114, %s115
      %p119 = pneg %p113
      %p120 = scmp.eq.s32.totalorder %s12, 1
      %p121 = por %p119, %p120
      %p122 = scmp.ne.s32.totalorder %s114, %s117
      %p123 = scmp.eq.s32.totalorder %s12, 0
      %p124 = por %p122, %p123
      %p125 = scmp.ne.s32.totalorder %s114, %s117
      %p126 = scmp.eq.s32.totalorder %s17, 1
      %p127 = por %p125, %p126
      %p128 = scmp.ne.s32.totalorder %s117, %s118
      %p129 = scmp.eq.s32.totalorder %s17, 0
      %p130 = por %p128, %p129
      %p131 = scmp.ne.s32.totalorder %s117, %s118
      %p132 = scmp.eq.s32.totalorder %s18, 1
      %p133 = por %p131, %p132
      %p135 = scmp.ne.s32.totalorder %s118, %s134
      %p136 = scmp.eq.s32.totalorder %s18, 0
      %p137 = por %p135, %p136
      %p138 = scmp.le.s32.totalorder 1, %s12
      %p139 = scmp.lt.s32.totalorder %s12, 3
      %p140 = pnand %p138, %p139
      %p141 = pneg %p140
      // Predicated region
      $region9: #{tpu_custom_call.1} parent=5 // pred_check
        _
      $region10: #{tpu_custom_call.1} parent=5 // pred_check_branch
        %143 = sbr.rel (%p140) target = $region12
      $region11: #{tpu_custom_call.1} parent=5 // pred_region
        %s144 = ssub.s32 %s12, 1
        // Predicated region
        $region13: #{tpu_custom_call.1} parent=11 // pred_check
          %p145 = pneg %p76
        $region14: #{tpu_custom_call.1} parent=11 // pred_check_branch
          %147 = sbr.rel (%p145) target = $region16
        $region15: #{tpu_custom_call.1} parent=11 // pred_region
          %p148 = scmp.lt.s32.totalorder %s22, 0
          %s149 = scalar_select %p148, %s22, 0
          %s150 = smul.addr %s149, 4
          %s151 = scalar_lea.vmem %s1, %s150
        $region16: #{tpu_custom_call.1} parent=11 // pred_fallthru
          _
        // Predicated region
        $region17: #{tpu_custom_call.1} parent=11 // pred_check
          %p152 = pneg %p102
        $region18: #{tpu_custom_call.1} parent=11 // pred_check_branch
          %154 = sbr.rel (%p152) target = $region20
        $region19: #{tpu_custom_call.1} parent=11 // pred_region
          %p155 = scmp.lt.s32.totalorder %s22, 0
          %s156 = scalar_select %p155, %s22, 0
          %s157 = smul.addr %s156, 4
          %s158 = scalar_lea.vmem %s2, %s157
        $region20: #{tpu_custom_call.1} parent=11 // pred_fallthru
          _
      $region12: #{tpu_custom_call.1} parent=5 // pred_fallthru
        _
      %p159 = scmp.lt.s32.totalorder %s12, 2
      // Predicated region
      $region21: #{tpu_custom_call.1} parent=5 // pred_check
        %p160 = pneg %p159
      $region22: #{tpu_custom_call.1} parent=5 // pred_check_branch
        %162 = sbr.rel (%p160) target = $region24
      $region23: #{tpu_custom_call.1} parent=5 // pred_region
        // Predicated region
        $region25: #{tpu_custom_call.1} parent=23 // pred_check
          %p163 = pneg %p44
        $region26: #{tpu_custom_call.1} parent=23 // pred_check_branch
          %165 = sbr.rel (%p163) target = $region28
        $region27: #{tpu_custom_call.1} parent=23 // pred_region
          %p166 = scmp.lt.s32.totalorder %s19, 1
          %s167 = scalar_select %p166, %s19, 1
          %s168 = smul.addr %s167, 2
          %s169 = smul.addr %s168, 4
          %s170 = scalar_lea.vmem %s0, %s169
        $region28: #{tpu_custom_call.1} parent=23 // pred_fallthru
          _
      $region24: #{tpu_custom_call.1} parent=5 // pred_fallthru
        _
      %p171 = scmp.le.s32.totalorder 1, %s12
      %p172 = scmp.lt.s32.totalorder %s12, 3
      %p173 = pnand %p171, %p172
      %p174 = pneg %p173
      // Predicated region
      $region29: #{tpu_custom_call.1} parent=5 // pred_check
        _
      $region30: #{tpu_custom_call.1} parent=5 // pred_check_branch
        %176 = sbr.rel (%p173) target = $region32
      $region31: #{tpu_custom_call.1} parent=5 // pred_region
        %s177 = ssub.s32 %s12, 1
        %p178 = scmp.lt.s32.totalorder %s21, 1
        %s179 = scalar_select %p178, %s21, 1
        %s180 = smul.addr %s179, 2
        %s181 = smul.addr %s180, 4
        %s182 = scalar_lea.vmem %s0, %s181
        %p183 = pneg %p50
        %p184 = pneg %p47
        %p185 = scmp.lt.s32.totalorder %s22, 0
        %s186 = scalar_select %p185, %s22, 0
        %s187 = smul.addr %s186, 4
        %s188 = scalar_lea.vmem %s1, %s187
        %p189 = pneg %p76
        %p190 = pneg %p73
        %p191 = scmp.lt.s32.totalorder %s22, 0
        %s192 = scalar_select %p191, %s22, 0
        %s193 = smul.addr %s192, 4
        %s194 = scalar_lea.vmem %s2, %s193
        %p195 = pneg %p102
        %p196 = pneg %p99
        %p197 = pneg %p130
        %p198 = pneg %p127
        %s199 = sand.u32 %s117, 1
        %s200 = scalar_lea.sflag [#allocation3], %s199
        %s201 = sand.u32 %s117, 1
        %s202 = smul.addr %s201, 4
        %s203 = scalar_lea.vmem [#allocation2], %s202
        %p204 = scmp.lt.s32.totalorder %s21, 1
        %s205 = scalar_select %p204, %s21, 1
        %s206 = smul.addr %s205, 2
        %s207 = smul.addr %s206, 4
        %s208 = scalar_lea.vmem %s0, %s207
        %p209 = scmp.lt.s32.totalorder %s22, 0
        %s210 = scalar_select %p209, %s22, 0
        %s211 = smul.addr %s210, 4
        %s212 = scalar_lea.vmem %s1, %s211
        %p213 = scmp.lt.s32.totalorder %s22, 0
        %s214 = scalar_select %p213, %s22, 0
        %s215 = smul.addr %s214, 4
        %s216 = scalar_lea.vmem %s2, %s215
        %v217 = vld [vmem:[%s208] sm:$0x7]
        %v218 = vld [vmem:[%s212] sm:$0xf]
        %v219 = vld [vmem:[%s208] sm:$0x77]
        %s220 = scalar_lea.vmem %s212, 4
        %v221 = vld [vmem:[%s220] sm:$0xf]
        %v223 = vcombine.high %v219, %v219
        %224 = vrot.lane.b32.xlu0 %v219, 127
        %v225 = vpop.permute.xlu0 %224
        %226 = vrot.lane.b32.xlu0 %v223, 127
        %v227 = vpop.permute.xlu0 %226
        %vm228 = vcmask 1039360
        %v229 = vsel %vm228, %v225, %v227
        %vm230 = vcmask 23552
        %v232 = vsel %vm230, %v221, 0
        %vm234 = vcmask 1042432
        %v235 = vsel %vm234, %v229, 0
        %237 = vmatprep.subr.mxu0 0.0
        %238 = vmatpush1.msra.mxu0 0.0
        %239 = vmatprep.subr.mxu0 0.0
        %240 = vmatpush1.msra.mxu0 0.0
        %241 = vmatprep.subr.mxu0 0.0
        %242 = vmatpush1.msra.mxu0 0.0
        %243 = vmatprep.subr.mxu0 0.0
        %244 = vmatpush1.msra.mxu0 0.0
        %245 = vmatprep.subr.mxu0 0.0
        %246 = vmatpush1.msra.mxu0 0.0
        %247 = vmatprep.subr.mxu0 0.0
        %248 = vmatpush1.msra.mxu0 0.0
        %249 = vmatprep.subr.mxu0 0.0
        %250 = vmatpush1.msra.mxu0 0.0
        %251 = vmatprep.subr.mxu0 0.0
        %252 = vmatpush1.msra.mxu0 0.0
        %253 = vmatprep.subr.mxu0 0.0
        %254 = vmatpush1.msra.mxu0 0.0
        %255 = vmatprep.subr.mxu0 0.0
        %256 = vmatpush1.msra.mxu0 0.0
        %257 = vmatprep.subr.mxu0 0.0
        %258 = vmatpush1.msra.mxu0 0.0
        %259 = vmatprep.subr.mxu0 0.0
        %260 = vmatpush1.msra.mxu0 0.0
        %261 = vmatprep.subr.mxu0 0.0
        %262 = vmatpush1.msra.mxu0 0.0
        %263 = vmatprep.subr.mxu0 0.0
        %264 = vmatpush1.msra.mxu0 0.0
        %265 = vmatprep.subr.mxu0 0.0
        %266 = vmatpush1.msra.mxu0 0.0
        %267 = vmatprep.subr.mxu0 0.0
        %268 = vmatpush1.msra.mxu0 %v235
        %269 = vmatprep.subr.mxu0 0.0
        %270 = vmatpush2.msra.mxu0 0.0
        %271 = vmatprep.subr.mxu0 0.0
        %272 = vmatpush2.msra.mxu0 0.0
        %273 = vmatprep.subr.mxu0 0.0
        %274 = vmatpush2.msra.mxu0 0.0
        %275 = vmatprep.subr.mxu0 0.0
        %276 = vmatpush2.msra.mxu0 0.0
        %277 = vmatprep.subr.mxu0 0.0
        %278 = vmatpush2.msra.mxu0 0.0
        %279 = vmatprep.subr.mxu0 0.0
        %280 = vmatpush2.msra.mxu0 0.0
        %281 = vmatprep.subr.mxu0 0.0
        %282 = vmatpush2.msra.mxu0 0.0
        %283 = vmatprep.subr.mxu0 0.0
        %284 = vmatpush2.msra.mxu0 0.0
        %285 = vmatprep.subr.mxu0 0.0
        %286 = vmatpush2.msra.mxu0 0.0
        %287 = vmatprep.subr.mxu0 0.0
        %288 = vmatpush2.msra.mxu0 0.0
        %289 = vmatprep.subr.mxu0 0.0
        %290 = vmatpush2.msra.mxu0 0.0
        %291 = vmatprep.subr.mxu0 0.0
        %292 = vmatpush2.msra.mxu0 0.0
        %293 = vmatprep.subr.mxu0 0.0
        %294 = vmatpush2.msra.mxu0 0.0
        %295 = vmatprep.subr.mxu0 0.0
        %296 = vmatpush2.msra.mxu0 0.0
        %297 = vmatprep.subr.mxu0 0.0
        %298 = vmatpush2.msra.mxu0 0.0
        %299 = vmatprep.subr.mxu0 0.0
        %300 = vmatpush2.msra.mxu0 0.0
        %301 = vmatprep.mubr.f32.mxu0 0.0
        %302 = vmatmul.mubr.f32.gmra.mxu0 %v232
        %v303 = vpop.f32.mrf.mxu0
        %v304 = vadd.f32 0.0, %v303
        %v305 = vpop.f32.mrf.mxu0
        %306 = vdwg.mxu0
        %v308 = vsel %vm230, %v218, 0
        %v311 = vsel %vm234, %v217, 0
        %313 = vmatprep.subr.mxu0 0.0
        %314 = vmatpush1.msra.mxu0 0.0
        %315 = vmatprep.subr.mxu0 0.0
        %316 = vmatpush1.msra.mxu0 0.0
        %317 = vmatprep.subr.mxu0 0.0
        %318 = vmatpush1.msra.mxu0 0.0
        %319 = vmatprep.subr.mxu0 0.0
        %320 = vmatpush1.msra.mxu0 0.0
        %321 = vmatprep.subr.mxu0 0.0
        %322 = vmatpush1.msra.mxu0 0.0
        %323 = vmatprep.subr.mxu0 0.0
        %324 = vmatpush1.msra.mxu0 0.0
        %325 = vmatprep.subr.mxu0 0.0
        %326 = vmatpush1.msra.mxu0 0.0
        %327 = vmatprep.subr.mxu0 0.0
        %328 = vmatpush1.msra.mxu0 0.0
        %329 = vmatprep.subr.mxu0 0.0
        %330 = vmatpush1.msra.mxu0 0.0
        %331 = vmatprep.subr.mxu0 0.0
        %332 = vmatpush1.msra.mxu0 0.0
        %333 = vmatprep.subr.mxu0 0.0
        %334 = vmatpush1.msra.mxu0 0.0
        %335 = vmatprep.subr.mxu0 0.0
        %336 = vmatpush1.msra.mxu0 0.0
        %337 = vmatprep.subr.mxu0 0.0
        %338 = vmatpush1.msra.mxu0 0.0
        %339 = vmatprep.subr.mxu0 0.0
        %340 = vmatpush1.msra.mxu0 0.0
        %341 = vmatprep.subr.mxu0 0.0
        %342 = vmatpush1.msra.mxu0 0.0
        %343 = vmatprep.subr.mxu0 0.0
        %344 = vmatpush1.msra.mxu0 %v311
        %345 = vmatprep.subr.mxu0 0.0
        %346 = vmatpush2.msra.mxu0 0.0
        %347 = vmatprep.subr.mxu0 0.0
        %348 = vmatpush2.msra.mxu0 0.0
        %349 = vmatprep.subr.mxu0 0.0
        %350 = vmatpush2.msra.mxu0 0.0
        %351 = vmatprep.subr.mxu0 0.0
        %352 = vmatpush2.msra.mxu0 0.0
        %353 = vmatprep.subr.mxu0 0.0
        %354 = vmatpush2.msra.mxu0 0.0
        %355 = vmatprep.subr.mxu0 0.0
        %356 = vmatpush2.msra.mxu0 0.0
        %357 = vmatprep.subr.mxu0 0.0
        %358 = vmatpush2.msra.mxu0 0.0
        %359 = vmatprep.subr.mxu0 0.0
        %360 = vmatpush2.msra.mxu0 0.0
        %361 = vmatprep.subr.mxu0 0.0
        %362 = vmatpush2.msra.mxu0 0.0
        %363 = vmatprep.subr.mxu0 0.0
        %364 = vmatpush2.msra.mxu0 0.0
        %365 = vmatprep.subr.mxu0 0.0
        %366 = vmatpush2.msra.mxu0 0.0
        %367 = vmatprep.subr.mxu0 0.0
        %368 = vmatpush2.msra.mxu0 0.0
        %369 = vmatprep.subr.mxu0 0.0
        %370 = vmatpush2.msra.mxu0 0.0
        %371 = vmatprep.subr.mxu0 0.0
        %372 = vmatpush2.msra.mxu0 0.0
        %373 = vmatprep.subr.mxu0 0.0
        %374 = vmatpush2.msra.mxu0 0.0
        %375 = vmatprep.subr.mxu0 0.0
        %376 = vmatpush2.msra.mxu0 0.0
        %377 = vmatprep.mubr.f32.mxu0 0.0
        %378 = vmatmul.mubr.f32.gmra.mxu0 %v308
        %v379 = vpop.f32.mrf.mxu0
        %v380 = vadd.f32 %v304, %v379
        %v381 = vpop.f32.mrf.mxu0
        %382 = vdwg.mxu0
        %v383 = vld [vmem:[%s208] sm:$0x77]
        %s384 = scalar_lea.vmem %s212, 8
        %v385 = vld [vmem:[%s384] sm:$0xf]
        %v387 = vcombine.high %v383, %v383
        %388 = vrot.lane.b32.xlu0 %v383, 126
        %v389 = vpop.permute.xlu0 %388
        %390 = vrot.lane.b32.xlu0 %v387, 126
        %v391 = vpop.permute.xlu0 %390
        %vm392 = vcmask 1031168
        %v393 = vsel %vm392, %v389, %v391
        %v395 = vsel %vm230, %v385, 0
        %v397 = vsel %vm234, %v393, 0
        %399 = vmatprep.subr.mxu0 0.0
        %400 = vmatpush1.msra.mxu0 0.0
        %401 = vmatprep.subr.mxu0 0.0
        %402 = vmatpush1.msra.mxu0 0.0
        %403 = vmatprep.subr.mxu0 0.0
        %404 = vmatpush1.msra.mxu0 0.0
        %405 = vmatprep.subr.mxu0 0.0
        %406 = vmatpush1.msra.mxu0 0.0
        %407 = vmatprep.subr.mxu0 0.0
        %408 = vmatpush1.msra.mxu0 0.0
        %409 = vmatprep.subr.mxu0 0.0
        %410 = vmatpush1.msra.mxu0 0.0
        %411 = vmatprep.subr.mxu0 0.0
        %412 = vmatpush1.msra.mxu0 0.0
        %413 = vmatprep.subr.mxu0 0.0
        %414 = vmatpush1.msra.mxu0 0.0
        %415 = vmatprep.subr.mxu0 0.0
        %416 = vmatpush1.msra.mxu0 0.0
        %417 = vmatprep.subr.mxu0 0.0
        %418 = vmatpush1.msra.mxu0 0.0
        %419 = vmatprep.subr.mxu0 0.0
        %420 = vmatpush1.msra.mxu0 0.0
        %421 = vmatprep.subr.mxu0 0.0
        %422 = vmatpush1.msra.mxu0 0.0
        %423 = vmatprep.subr.mxu0 0.0
        %424 = vmatpush1.msra.mxu0 0.0
        %425 = vmatprep.subr.mxu0 0.0
        %426 = vmatpush1.msra.mxu0 0.0
        %427 = vmatprep.subr.mxu0 0.0
        %428 = vmatpush1.msra.mxu0 0.0
        %429 = vmatprep.subr.mxu0 0.0
        %430 = vmatpush1.msra.mxu0 %v397
        %431 = vmatprep.subr.mxu0 0.0
        %432 = vmatpush2.msra.mxu0 0.0
        %433 = vmatprep.subr.mxu0 0.0
        %434 = vmatpush2.msra.mxu0 0.0
        %435 = vmatprep.subr.mxu0 0.0
        %436 = vmatpush2.msra.mxu0 0.0
        %437 = vmatprep.subr.mxu0 0.0
        %438 = vmatpush2.msra.mxu0 0.0
        %439 = vmatprep.subr.mxu0 0.0
        %440 = vmatpush2.msra.mxu0 0.0
        %441 = vmatprep.subr.mxu0 0.0
        %442 = vmatpush2.msra.mxu0 0.0
        %443 = vmatprep.subr.mxu0 0.0
        %444 = vmatpush2.msra.mxu0 0.0
        %445 = vmatprep.subr.mxu0 0.0
        %446 = vmatpush2.msra.mxu0 0.0
        %447 = vmatprep.subr.mxu0 0.0
        %448 = vmatpush2.msra.mxu0 0.0
        %449 = vmatprep.subr.mxu0 0.0
        %450 = vmatpush2.msra.mxu0 0.0
        %451 = vmatprep.subr.mxu0 0.0
        %452 = vmatpush2.msra.mxu0 0.0
        %453 = vmatprep.subr.mxu0 0.0
        %454 = vmatpush2.msra.mxu0 0.0
        %455 = vmatprep.subr.mxu0 0.0
        %456 = vmatpush2.msra.mxu0 0.0
        %457 = vmatprep.subr.mxu0 0.0
        %458 = vmatpush2.msra.mxu0 0.0
        %459 = vmatprep.subr.mxu0 0.0
        %460 = vmatpush2.msra.mxu0 0.0
        %461 = vmatprep.subr.mxu0 0.0
        %462 = vmatpush2.msra.mxu0 0.0
        %463 = vmatprep.mubr.f32.mxu0 0.0
        %464 = vmatmul.mubr.f32.gmra.mxu0 %v395
        %v465 = vpop.f32.mrf.mxu0
        %v466 = vadd.f32 0.0, %v465
        %v467 = vpop.f32.mrf.mxu0
        %468 = vdwg.mxu0
        %v469 = vadd.f32 %v380, %v466
        %v470 = vld [vmem:[%s208] sm:$0x77]
        %s471 = scalar_lea.vmem %s212, 12
        %v472 = vld [vmem:[%s471] sm:$0xf]
        %v474 = vcombine.high %v470, %v470
        %475 = vrot.lane.b32.xlu0 %v470, 118
        %v476 = vpop.permute.xlu0 %475
        %477 = vrot.lane.b32.xlu0 %v474, 118
        %v478 = vpop.permute.xlu0 %477
        %vm479 = vcmask 965632
        %v480 = vsel %vm479, %v476, %v478
        %v482 = vsel %vm230, %v472, 0
        %v484 = vsel %vm234, %v480, 0
        %486 = vmatprep.subr.mxu0 0.0
        %487 = vmatpush1.msra.mxu0 0.0
        %488 = vmatprep.subr.mxu0 0.0
        %489 = vmatpush1.msra.mxu0 0.0
        %490 = vmatprep.subr.mxu0 0.0
        %491 = vmatpush1.msra.mxu0 0.0
        %492 = vmatprep.subr.mxu0 0.0
        %493 = vmatpush1.msra.mxu0 0.0
        %494 = vmatprep.subr.mxu0 0.0
        %495 = vmatpush1.msra.mxu0 0.0
        %496 = vmatprep.subr.mxu0 0.0
        %497 = vmatpush1.msra.mxu0 0.0
        %498 = vmatprep.subr.mxu0 0.0
        %499 = vmatpush1.msra.mxu0 0.0
        %500 = vmatprep.subr.mxu0 0.0
        %501 = vmatpush1.msra.mxu0 0.0
        %502 = vmatprep.subr.mxu0 0.0
        %503 = vmatpush1.msra.mxu0 0.0
        %504 = vmatprep.subr.mxu0 0.0
        %505 = vmatpush1.msra.mxu0 0.0
        %506 = vmatprep.subr.mxu0 0.0
        %507 = vmatpush1.msra.mxu0 0.0
        %508 = vmatprep.subr.mxu0 0.0
        %509 = vmatpush1.msra.mxu0 0.0
        %510 = vmatprep.subr.mxu0 0.0
        %511 = vmatpush1.msra.mxu0 0.0
        %512 = vmatprep.subr.mxu0 0.0
        %513 = vmatpush1.msra.mxu0 0.0
        %514 = vmatprep.subr.mxu0 0.0
        %515 = vmatpush1.msra.mxu0 0.0
        %516 = vmatprep.subr.mxu0 0.0
        %517 = vmatpush1.msra.mxu0 %v484
        %518 = vmatprep.subr.mxu0 0.0
        %519 = vmatpush2.msra.mxu0 0.0
        %520 = vmatprep.subr.mxu0 0.0
        %521 = vmatpush2.msra.mxu0 0.0
        %522 = vmatprep.subr.mxu0 0.0
        %523 = vmatpush2.msra.mxu0 0.0
        %524 = vmatprep.subr.mxu0 0.0
        %525 = vmatpush2.msra.mxu0 0.0
        %526 = vmatprep.subr.mxu0 0.0
        %527 = vmatpush2.msra.mxu0 0.0
        %528 = vmatprep.subr.mxu0 0.0
        %529 = vmatpush2.msra.mxu0 0.0
        %530 = vmatprep.subr.mxu0 0.0
        %531 = vmatpush2.msra.mxu0 0.0
        %532 = vmatprep.subr.mxu0 0.0
        %533 = vmatpush2.msra.mxu0 0.0
        %534 = vmatprep.subr.mxu0 0.0
        %535 = vmatpush2.msra.mxu0 0.0
        %536 = vmatprep.subr.mxu0 0.0
        %537 = vmatpush2.msra.mxu0 0.0
        %538 = vmatprep.subr.mxu0 0.0
        %539 = vmatpush2.msra.mxu0 0.0
        %540 = vmatprep.subr.mxu0 0.0
        %541 = vmatpush2.msra.mxu0 0.0
        %542 = vmatprep.subr.mxu0 0.0
        %543 = vmatpush2.msra.mxu0 0.0
        %544 = vmatprep.subr.mxu0 0.0
        %545 = vmatpush2.msra.mxu0 0.0
        %546 = vmatprep.subr.mxu0 0.0
        %547 = vmatpush2.msra.mxu0 0.0
        %548 = vmatprep.subr.mxu0 0.0
        %549 = vmatpush2.msra.mxu0 0.0
        %550 = vmatprep.mubr.f32.mxu0 0.0
        %551 = vmatmul.mubr.f32.gmra.mxu0 %v482
        %v552 = vpop.f32.mrf.mxu0
        %v553 = vadd.f32 0.0, %v552
        %v554 = vpop.f32.mrf.mxu0
        %555 = vdwg.mxu0
        %v556 = vadd.f32 %v469, %v553
        %v557 = vld [vmem:[%s208] sm:$0x77]
        %s558 = scalar_lea.vmem %s212, 16
        %v559 = vld [vmem:[%s558] sm:$0xf]
        %v561 = vcombine.high %v557, %v557
        %562 = vrot.lane.b32.xlu0 %v557, 117
        %v563 = vpop.permute.xlu0 %562
        %564 = vrot.lane.b32.xlu0 %v561, 117
        %v565 = vpop.permute.xlu0 %564
        %vm566 = vcmask 957440
        %v567 = vsel %vm566, %v563, %v565
        %v569 = vsel %vm230, %v559, 0
        %v571 = vsel %vm234, %v567, 0
        %573 = vmatprep.subr.mxu0 0.0
        %574 = vmatpush1.msra.mxu0 0.0
        %575 = vmatprep.subr.mxu0 0.0
        %576 = vmatpush1.msra.mxu0 0.0
        %577 = vmatprep.subr.mxu0 0.0
        %578 = vmatpush1.msra.mxu0 0.0
        %579 = vmatprep.subr.mxu0 0.0
        %580 = vmatpush1.msra.mxu0 0.0
        %581 = vmatprep.subr.mxu0 0.0
        %582 = vmatpush1.msra.mxu0 0.0
        %583 = vmatprep.subr.mxu0 0.0
        %584 = vmatpush1.msra.mxu0 0.0
        %585 = vmatprep.subr.mxu0 0.0
        %586 = vmatpush1.msra.mxu0 0.0
        %587 = vmatprep.subr.mxu0 0.0
        %588 = vmatpush1.msra.mxu0 0.0
        %589 = vmatprep.subr.mxu0 0.0
        %590 = vmatpush1.msra.mxu0 0.0
        %591 = vmatprep.subr.mxu0 0.0
        %592 = vmatpush1.msra.mxu0 0.0
        %593 = vmatprep.subr.mxu0 0.0
        %594 = vmatpush1.msra.mxu0 0.0
        %595 = vmatprep.subr.mxu0 0.0
        %596 = vmatpush1.msra.mxu0 0.0
        %597 = vmatprep.subr.mxu0 0.0
        %598 = vmatpush1.msra.mxu0 0.0
        %599 = vmatprep.subr.mxu0 0.0
        %600 = vmatpush1.msra.mxu0 0.0
        %601 = vmatprep.subr.mxu0 0.0
        %602 = vmatpush1.msra.mxu0 0.0
        %603 = vmatprep.subr.mxu0 0.0
        %604 = vmatpush1.msra.mxu0 %v571
        %605 = vmatprep.subr.mxu0 0.0
        %606 = vmatpush2.msra.mxu0 0.0
        %607 = vmatprep.subr.mxu0 0.0
        %608 = vmatpush2.msra.mxu0 0.0
        %609 = vmatprep.subr.mxu0 0.0
        %610 = vmatpush2.msra.mxu0 0.0
        %611 = vmatprep.subr.mxu0 0.0
        %612 = vmatpush2.msra.mxu0 0.0
        %613 = vmatprep.subr.mxu0 0.0
        %614 = vmatpush2.msra.mxu0 0.0
        %615 = vmatprep.subr.mxu0 0.0
        %616 = vmatpush2.msra.mxu0 0.0
        %617 = vmatprep.subr.mxu0 0.0
        %618 = vmatpush2.msra.mxu0 0.0
        %619 = vmatprep.subr.mxu0 0.0
        %620 = vmatpush2.msra.mxu0 0.0
        %621 = vmatprep.subr.mxu0 0.0
        %622 = vmatpush2.msra.mxu0 0.0
        %623 = vmatprep.subr.mxu0 0.0
        %624 = vmatpush2.msra.mxu0 0.0
        %625 = vmatprep.subr.mxu0 0.0
        %626 = vmatpush2.msra.mxu0 0.0
        %627 = vmatprep.subr.mxu0 0.0
        %628 = vmatpush2.msra.mxu0 0.0
        %629 = vmatprep.subr.mxu0 0.0
        %630 = vmatpush2.msra.mxu0 0.0
        %631 = vmatprep.subr.mxu0 0.0
        %632 = vmatpush2.msra.mxu0 0.0
        %633 = vmatprep.subr.mxu0 0.0
        %634 = vmatpush2.msra.mxu0 0.0
        %635 = vmatprep.subr.mxu0 0.0
        %636 = vmatpush2.msra.mxu0 0.0
        %637 = vmatprep.mubr.f32.mxu0 0.0
        %638 = vmatmul.mubr.f32.gmra.mxu0 %v569
        %v639 = vpop.f32.mrf.mxu0
        %v640 = vadd.f32 0.0, %v639
        %v641 = vpop.f32.mrf.mxu0
        %642 = vdwg.mxu0
        %v643 = vadd.f32 %v556, %v640
        %v644 = vld [vmem:[%s208] sm:$0x77]
        %s645 = scalar_lea.vmem %s212, 20
        %v646 = vld [vmem:[%s645] sm:$0xf]
        %v648 = vcombine.high %v644, %v644
        %649 = vrot.lane.b32.xlu0 %v644, 116
        %v650 = vpop.permute.xlu0 %649
        %651 = vrot.lane.b32.xlu0 %v648, 116
        %v652 = vpop.permute.xlu0 %651
        %vm653 = vcmask 949248
        %v654 = vsel %vm653, %v650, %v652
        %v656 = vsel %vm230, %v646, 0
        %v658 = vsel %vm234, %v654, 0
        %660 = vmatprep.subr.mxu0 0.0
        %661 = vmatpush1.msra.mxu0 0.0
        %662 = vmatprep.subr.mxu0 0.0
        %663 = vmatpush1.msra.mxu0 0.0
        %664 = vmatprep.subr.mxu0 0.0
        %665 = vmatpush1.msra.mxu0 0.0
        %666 = vmatprep.subr.mxu0 0.0
        %667 = vmatpush1.msra.mxu0 0.0
        %668 = vmatprep.subr.mxu0 0.0
        %669 = vmatpush1.msra.mxu0 0.0
        %670 = vmatprep.subr.mxu0 0.0
        %671 = vmatpush1.msra.mxu0 0.0
        %672 = vmatprep.subr.mxu0 0.0
        %673 = vmatpush1.msra.mxu0 0.0
        %674 = vmatprep.subr.mxu0 0.0
        %675 = vmatpush1.msra.mxu0 0.0
        %676 = vmatprep.subr.mxu0 0.0
        %677 = vmatpush1.msra.mxu0 0.0
        %678 = vmatprep.subr.mxu0 0.0
        %679 = vmatpush1.msra.mxu0 0.0
        %680 = vmatprep.subr.mxu0 0.0
        %681 = vmatpush1.msra.mxu0 0.0
        %682 = vmatprep.subr.mxu0 0.0
        %683 = vmatpush1.msra.mxu0 0.0
        %684 = vmatprep.subr.mxu0 0.0
        %685 = vmatpush1.msra.mxu0 0.0
        %686 = vmatprep.subr.mxu0 0.0
        %687 = vmatpush1.msra.mxu0 0.0
        %688 = vmatprep.subr.mxu0 0.0
        %689 = vmatpush1.msra.mxu0 0.0
        %690 = vmatprep.subr.mxu0 0.0
        %691 = vmatpush1.msra.mxu0 %v658
        %692 = vmatprep.subr.mxu0 0.0
        %693 = vmatpush2.msra.mxu0 0.0
        %694 = vmatprep.subr.mxu0 0.0
        %695 = vmatpush2.msra.mxu0 0.0
        %696 = vmatprep.subr.mxu0 0.0
        %697 = vmatpush2.msra.mxu0 0.0
        %698 = vmatprep.subr.mxu0 0.0
        %699 = vmatpush2.msra.mxu0 0.0
        %700 = vmatprep.subr.mxu0 0.0
        %701 = vmatpush2.msra.mxu0 0.0
        %702 = vmatprep.subr.mxu0 0.0
        %703 = vmatpush2.msra.mxu0 0.0
        %704 = vmatprep.subr.mxu0 0.0
        %705 = vmatpush2.msra.mxu0 0.0
        %706 = vmatprep.subr.mxu0 0.0
        %707 = vmatpush2.msra.mxu0 0.0
        %708 = vmatprep.subr.mxu0 0.0
        %709 = vmatpush2.msra.mxu0 0.0
        %710 = vmatprep.subr.mxu0 0.0
        %711 = vmatpush2.msra.mxu0 0.0
        %712 = vmatprep.subr.mxu0 0.0
        %713 = vmatpush2.msra.mxu0 0.0
        %714 = vmatprep.subr.mxu0 0.0
        %715 = vmatpush2.msra.mxu0 0.0
        %716 = vmatprep.subr.mxu0 0.0
        %717 = vmatpush2.msra.mxu0 0.0
        %718 = vmatprep.subr.mxu0 0.0
        %719 = vmatpush2.msra.mxu0 0.0
        %720 = vmatprep.subr.mxu0 0.0
        %721 = vmatpush2.msra.mxu0 0.0
        %722 = vmatprep.subr.mxu0 0.0
        %723 = vmatpush2.msra.mxu0 0.0
        %724 = vmatprep.mubr.f32.mxu0 0.0
        %725 = vmatmul.mubr.f32.gmra.mxu0 %v656
        %v726 = vpop.f32.mrf.mxu0
        %v727 = vadd.f32 0.0, %v726
        %v728 = vpop.f32.mrf.mxu0
        %729 = vdwg.mxu0
        %v730 = vadd.f32 %v643, %v727
        %v731 = vld [vmem:[%s208] sm:$0x77]
        %s732 = scalar_lea.vmem %s212, 24
        %v733 = vld [vmem:[%s732] sm:$0xf]
        %v735 = vcombine.high %v731, %v731
        %736 = vrot.lane.b32.xlu0 %v731, 108
        %v737 = vpop.permute.xlu0 %736
        %738 = vrot.lane.b32.xlu0 %v735, 108
        %v739 = vpop.permute.xlu0 %738
        %vm740 = vcmask 883712
        %v741 = vsel %vm740, %v737, %v739
        %v743 = vsel %vm230, %v733, 0
        %v745 = vsel %vm234, %v741, 0
        %747 = vmatprep.subr.mxu0 0.0
        %748 = vmatpush1.msra.mxu0 0.0
        %749 = vmatprep.subr.mxu0 0.0
        %750 = vmatpush1.msra.mxu0 0.0
        %751 = vmatprep.subr.mxu0 0.0
        %752 = vmatpush1.msra.mxu0 0.0
        %753 = vmatprep.subr.mxu0 0.0
        %754 = vmatpush1.msra.mxu0 0.0
        %755 = vmatprep.subr.mxu0 0.0
        %756 = vmatpush1.msra.mxu0 0.0
        %757 = vmatprep.subr.mxu0 0.0
        %758 = vmatpush1.msra.mxu0 0.0
        %759 = vmatprep.subr.mxu0 0.0
        %760 = vmatpush1.msra.mxu0 0.0
        %761 = vmatprep.subr.mxu0 0.0
        %762 = vmatpush1.msra.mxu0 0.0
        %763 = vmatprep.subr.mxu0 0.0
        %764 = vmatpush1.msra.mxu0 0.0
        %765 = vmatprep.subr.mxu0 0.0
        %766 = vmatpush1.msra.mxu0 0.0
        %767 = vmatprep.subr.mxu0 0.0
        %768 = vmatpush1.msra.mxu0 0.0
        %769 = vmatprep.subr.mxu0 0.0
        %770 = vmatpush1.msra.mxu0 0.0
        %771 = vmatprep.subr.mxu0 0.0
        %772 = vmatpush1.msra.mxu0 0.0
        %773 = vmatprep.subr.mxu0 0.0
        %774 = vmatpush1.msra.mxu0 0.0
        %775 = vmatprep.subr.mxu0 0.0
        %776 = vmatpush1.msra.mxu0 0.0
        %777 = vmatprep.subr.mxu0 0.0
        %778 = vmatpush1.msra.mxu0 %v745
        %779 = vmatprep.subr.mxu0 0.0
        %780 = vmatpush2.msra.mxu0 0.0
        %781 = vmatprep.subr.mxu0 0.0
        %782 = vmatpush2.msra.mxu0 0.0
        %783 = vmatprep.subr.mxu0 0.0
        %784 = vmatpush2.msra.mxu0 0.0
        %785 = vmatprep.subr.mxu0 0.0
        %786 = vmatpush2.msra.mxu0 0.0
        %787 = vmatprep.subr.mxu0 0.0
        %788 = vmatpush2.msra.mxu0 0.0
        %789 = vmatprep.subr.mxu0 0.0
        %790 = vmatpush2.msra.mxu0 0.0
        %791 = vmatprep.subr.mxu0 0.0
        %792 = vmatpush2.msra.mxu0 0.0
        %793 = vmatprep.subr.mxu0 0.0
        %794 = vmatpush2.msra.mxu0 0.0
        %795 = vmatprep.subr.mxu0 0.0
        %796 = vmatpush2.msra.mxu0 0.0
        %797 = vmatprep.subr.mxu0 0.0
        %798 = vmatpush2.msra.mxu0 0.0
        %799 = vmatprep.subr.mxu0 0.0
        %800 = vmatpush2.msra.mxu0 0.0
        %801 = vmatprep.subr.mxu0 0.0
        %802 = vmatpush2.msra.mxu0 0.0
        %803 = vmatprep.subr.mxu0 0.0
        %804 = vmatpush2.msra.mxu0 0.0
        %805 = vmatprep.subr.mxu0 0.0
        %806 = vmatpush2.msra.mxu0 0.0
        %807 = vmatprep.subr.mxu0 0.0
        %808 = vmatpush2.msra.mxu0 0.0
        %809 = vmatprep.subr.mxu0 0.0
        %810 = vmatpush2.msra.mxu0 0.0
        %811 = vmatprep.mubr.f32.mxu0 0.0
        %812 = vmatmul.mubr.f32.gmra.mxu0 %v743
        %v813 = vpop.f32.mrf.mxu0
        %v814 = vadd.f32 0.0, %v813
        %v815 = vpop.f32.mrf.mxu0
        %816 = vdwg.mxu0
        %v817 = vadd.f32 %v730, %v814
        %v818 = vld [vmem:[%s208] sm:$0x77]
        %s819 = scalar_lea.vmem %s212, 28
        %v820 = vld [vmem:[%s819] sm:$0xf]
        %v822 = vcombine.high %v818, %v818
        %823 = vrot.lane.b32.xlu0 %v818, 107
        %v824 = vpop.permute.xlu0 %823
        %825 = vrot.lane.b32.xlu0 %v822, 107
        %v826 = vpop.permute.xlu0 %825
        %vm827 = vcmask 875520
        %v828 = vsel %vm827, %v824, %v826
        %v830 = vsel %vm230, %v820, 0
        %v832 = vsel %vm234, %v828, 0
        %834 = vmatprep.subr.mxu0 0.0
        %835 = vmatpush1.msra.mxu0 0.0
        %836 = vmatprep.subr.mxu0 0.0
        %837 = vmatpush1.msra.mxu0 0.0
        %838 = vmatprep.subr.mxu0 0.0
        %839 = vmatpush1.msra.mxu0 0.0
        %840 = vmatprep.subr.mxu0 0.0
        %841 = vmatpush1.msra.mxu0 0.0
        %842 = vmatprep.subr.mxu0 0.0
        %843 = vmatpush1.msra.mxu0 0.0
        %844 = vmatprep.subr.mxu0 0.0
        %845 = vmatpush1.msra.mxu0 0.0
        %846 = vmatprep.subr.mxu0 0.0
        %847 = vmatpush1.msra.mxu0 0.0
        %848 = vmatprep.subr.mxu0 0.0
        %849 = vmatpush1.msra.mxu0 0.0
        %850 = vmatprep.subr.mxu0 0.0
        %851 = vmatpush1.msra.mxu0 0.0
        %852 = vmatprep.subr.mxu0 0.0
        %853 = vmatpush1.msra.mxu0 0.0
        %854 = vmatprep.subr.mxu0 0.0
        %855 = vmatpush1.msra.mxu0 0.0
        %856 = vmatprep.subr.mxu0 0.0
        %857 = vmatpush1.msra.mxu0 0.0
        %858 = vmatprep.subr.mxu0 0.0
        %859 = vmatpush1.msra.mxu0 0.0
        %860 = vmatprep.subr.mxu0 0.0
        %861 = vmatpush1.msra.mxu0 0.0
        %862 = vmatprep.subr.mxu0 0.0
        %863 = vmatpush1.msra.mxu0 0.0
        %864 = vmatprep.subr.mxu0 0.0
        %865 = vmatpush1.msra.mxu0 %v832
        %866 = vmatprep.subr.mxu0 0.0
        %867 = vmatpush2.msra.mxu0 0.0
        %868 = vmatprep.subr.mxu0 0.0
        %869 = vmatpush2.msra.mxu0 0.0
        %870 = vmatprep.subr.mxu0 0.0
        %871 = vmatpush2.msra.mxu0 0.0
        %872 = vmatprep.subr.mxu0 0.0
        %873 = vmatpush2.msra.mxu0 0.0
        %874 = vmatprep.subr.mxu0 0.0
        %875 = vmatpush2.msra.mxu0 0.0
        %876 = vmatprep.subr.mxu0 0.0
        %877 = vmatpush2.msra.mxu0 0.0
        %878 = vmatprep.subr.mxu0 0.0
        %879 = vmatpush2.msra.mxu0 0.0
        %880 = vmatprep.subr.mxu0 0.0
        %881 = vmatpush2.msra.mxu0 0.0
        %882 = vmatprep.subr.mxu0 0.0
        %883 = vmatpush2.msra.mxu0 0.0
        %884 = vmatprep.subr.mxu0 0.0
        %885 = vmatpush2.msra.mxu0 0.0
        %886 = vmatprep.subr.mxu0 0.0
        %887 = vmatpush2.msra.mxu0 0.0
        %888 = vmatprep.subr.mxu0 0.0
        %889 = vmatpush2.msra.mxu0 0.0
        %890 = vmatprep.subr.mxu0 0.0
        %891 = vmatpush2.msra.mxu0 0.0
        %892 = vmatprep.subr.mxu0 0.0
        %893 = vmatpush2.msra.mxu0 0.0
        %894 = vmatprep.subr.mxu0 0.0
        %895 = vmatpush2.msra.mxu0 0.0
        %896 = vmatprep.subr.mxu0 0.0
        %897 = vmatpush2.msra.mxu0 0.0
        %898 = vmatprep.mubr.f32.mxu0 0.0
        %899 = vmatmul.mubr.f32.gmra.mxu0 %v830
        %v900 = vpop.f32.mrf.mxu0
        %v901 = vadd.f32 0.0, %v900
        %v902 = vpop.f32.mrf.mxu0
        %903 = vdwg.mxu0
        %v904 = vadd.f32 %v817, %v901
        %v905 = vld [vmem:[%s208] sm:$0x77]
        %s906 = scalar_lea.vmem %s212, 32
        %v907 = vld [vmem:[%s906] sm:$0xf]
        %v909 = vcombine.high %v905, %v905
        %910 = vrot.lane.b32.xlu0 %v905, 106
        %v911 = vpop.permute.xlu0 %910
        %912 = vrot.lane.b32.xlu0 %v909, 106
        %v913 = vpop.permute.xlu0 %912
        %vm914 = vcmask 867328
        %v915 = vsel %vm914, %v911, %v913
        %v917 = vsel %vm230, %v907, 0
        %v919 = vsel %vm234, %v915, 0
        %921 = vmatprep.subr.mxu0 0.0
        %922 = vmatpush1.msra.mxu0 0.0
        %923 = vmatprep.subr.mxu0 0.0
        %924 = vmatpush1.msra.mxu0 0.0
        %925 = vmatprep.subr.mxu0 0.0
        %926 = vmatpush1.msra.mxu0 0.0
        %927 = vmatprep.subr.mxu0 0.0
        %928 = vmatpush1.msra.mxu0 0.0
        %929 = vmatprep.subr.mxu0 0.0
        %930 = vmatpush1.msra.mxu0 0.0
        %931 = vmatprep.subr.mxu0 0.0
        %932 = vmatpush1.msra.mxu0 0.0
        %933 = vmatprep.subr.mxu0 0.0
        %934 = vmatpush1.msra.mxu0 0.0
        %935 = vmatprep.subr.mxu0 0.0
        %936 = vmatpush1.msra.mxu0 0.0
        %937 = vmatprep.subr.mxu0 0.0
        %938 = vmatpush1.msra.mxu0 0.0
        %939 = vmatprep.subr.mxu0 0.0
        %940 = vmatpush1.msra.mxu0 0.0
        %941 = vmatprep.subr.mxu0 0.0
        %942 = vmatpush1.msra.mxu0 0.0
        %943 = vmatprep.subr.mxu0 0.0
        %944 = vmatpush1.msra.mxu0 0.0
        %945 = vmatprep.subr.mxu0 0.0
        %946 = vmatpush1.msra.mxu0 0.0
        %947 = vmatprep.subr.mxu0 0.0
        %948 = vmatpush1.msra.mxu0 0.0
        %949 = vmatprep.subr.mxu0 0.0
        %950 = vmatpush1.msra.mxu0 0.0
        %951 = vmatprep.subr.mxu0 0.0
        %952 = vmatpush1.msra.mxu0 %v919
        %953 = vmatprep.subr.mxu0 0.0
        %954 = vmatpush2.msra.mxu0 0.0
        %955 = vmatprep.subr.mxu0 0.0
        %956 = vmatpush2.msra.mxu0 0.0
        %957 = vmatprep.subr.mxu0 0.0
        %958 = vmatpush2.msra.mxu0 0.0
        %959 = vmatprep.subr.mxu0 0.0
        %960 = vmatpush2.msra.mxu0 0.0
        %961 = vmatprep.subr.mxu0 0.0
        %962 = vmatpush2.msra.mxu0 0.0
        %963 = vmatprep.subr.mxu0 0.0
        %964 = vmatpush2.msra.mxu0 0.0
        %965 = vmatprep.subr.mxu0 0.0
        %966 = vmatpush2.msra.mxu0 0.0
        %967 = vmatprep.subr.mxu0 0.0
        %968 = vmatpush2.msra.mxu0 0.0
        %969 = vmatprep.subr.mxu0 0.0
        %970 = vmatpush2.msra.mxu0 0.0
        %971 = vmatprep.subr.mxu0 0.0
        %972 = vmatpush2.msra.mxu0 0.0
        %973 = vmatprep.subr.mxu0 0.0
        %974 = vmatpush2.msra.mxu0 0.0
        %975 = vmatprep.subr.mxu0 0.0
        %976 = vmatpush2.msra.mxu0 0.0
        %977 = vmatprep.subr.mxu0 0.0
        %978 = vmatpush2.msra.mxu0 0.0
        %979 = vmatprep.subr.mxu0 0.0
        %980 = vmatpush2.msra.mxu0 0.0
        %981 = vmatprep.subr.mxu0 0.0
        %982 = vmatpush2.msra.mxu0 0.0
        %983 = vmatprep.subr.mxu0 0.0
        %984 = vmatpush2.msra.mxu0 0.0
        %985 = vmatprep.mubr.f32.mxu0 0.0
        %986 = vmatmul.mubr.f32.gmra.mxu0 %v917
        %v987 = vpop.f32.mrf.mxu0
        %v988 = vadd.f32 0.0, %v987
        %v989 = vpop.f32.mrf.mxu0
        %990 = vdwg.mxu0
        %v991 = vadd.f32 %v904, %v988
        %v992 = vld [vmem:[%s216] sm:$0xf]
        %994 = vset.pattern.permute.xlu0 0
        %995 = vperm.xlu0 %994, %v992
        %v996 = vpop.permute.xlu0 %995
        %v998 = vadd.f32 %v991, %v996
        %999 = vst [vmem:[%s203] sm:$0xf] %v998
        %s1000 = sand.u32 %s117, 1
        %s1001 = scalar_lea.sflag [#allocation3], %s1000
        %s1002 = sand.u32 %s117, 1
        %s1003 = smul.addr %s1002, 4
        %s1004 = scalar_lea.vmem [#allocation2], %s1003
        // Predicated region
        $region33: #{tpu_custom_call.1} parent=31 // pred_check
          %p1005 = pneg %p127
        $region34: #{tpu_custom_call.1} parent=31 // pred_check_branch
          %1007 = sbr.rel (%p1005) target = $region36
        $region35: #{tpu_custom_call.1} parent=31 // pred_region
          %s1009 = ssub.s32 64, 64
          %1010 = vsyncadd %s1001, %s1009
          %s1011 = sadd.s32 %s22, %s21
          %s1012 = smul.addr %s1011, 64
          %s1013 = scalar_lea.hbm %s3, %s1012
          %s1015 = sshll.u32 %s1004, 4
          %s1016 = int_to_ptr.vmem [resolvable:$true] %s1015
          %1018 = dma.vmem_to_hbm [thread:$0]  %s1016, 64, %s1013, %s1001
        $region36: #{tpu_custom_call.1} parent=31 // pred_fallthru
          _
      $region32: #{tpu_custom_call.1} parent=5 // pred_fallthru
        _
      %p1019 = scmp.le.s32.totalorder 2, %s12
      // Predicated region
      $region37: #{tpu_custom_call.1} parent=5 // pred_check
        %p1020 = pneg %p1019
      $region38: #{tpu_custom_call.1} parent=5 // pred_check_branch
        %1022 = sbr.rel (%p1020) target = $region40
      $region39: #{tpu_custom_call.1} parent=5 // pred_region
        %s1023 = ssub.s32 %s12, 2
        // Predicated region
        $region41: #{tpu_custom_call.1} parent=39 // pred_check
          %p1024 = pneg %p133
        $region42: #{tpu_custom_call.1} parent=39 // pred_check_branch
          %1026 = sbr.rel (%p1024) target = $region44
        $region43: #{tpu_custom_call.1} parent=39 // pred_region
          %s1027 = sand.u32 %s118, 1
          %s1028 = scalar_lea.sflag [#allocation3], %s1027
          %s1029 = sand.u32 %s118, 1
          %s1030 = smul.addr %s1029, 4
          %s1031 = scalar_lea.vmem [#allocation2], %s1030
          %1032 = dma.done %s1028, 64
        $region44: #{tpu_custom_call.1} parent=39 // pred_fallthru
          _
      $region40: #{tpu_custom_call.1} parent=5 // pred_fallthru
        _
    $region6: #{tpu_custom_call.1} parent=1 // loop_footer
      %s16 = sadd.s32 1, %s12
    $region7: #{tpu_custom_call.1} parent=1 // loop_footer_branch
      %11 = sbr.rel target = $region3
    $region8: #{tpu_custom_call.1} parent=1 // loop_exit
      _
    %1033 = vsyncpa [#allocation3], 1
    %s1034 = scalar_lea.sflag [#allocation3], 1
    %1035 = vsyncpa %s1034, 1

</llo_original>
